<compile_context>
chip_gen: v5e
topology: v5e:2x2
jax: 0.10.0
libtpu: 0.0.40
codegen_flags: <defaults>
</compile_context>

<pallas_src>
import functools

import jax
import jax.numpy as jnp
import numpy as np
from jax import lax
from jax.experimental import pallas as pl
from jax.experimental.pallas import tpu as pltpu


def cam_kernel(x_ref, ph3_ref, pw3_ref, w1_ref, w2_ref, eh_ref, ew_ref,
               bias_ref, wsp1_ref, wsp2_ref, out_ref, *, H, W):
    f32 = jnp.float32
    bf16 = jnp.bfloat16

    x3 = x_ref[...]                               # (TB, C, HW) f32, lane-dense
    TB, C, HW = x3.shape

    # ---------------- ChannelAttention (all MXU, bf16 operands) ----------------
    # Pooling + the three conv-tap shifts are folded into one matmul per branch.
    x2d = x3.reshape(TB * C, HW)
    xb = x2d.astype(bf16)
    x1 = jnp.dot(xb, ph3_ref[...], preferred_element_type=f32)   # (TBC, 3H)
    x2 = jnp.dot(xb, pw3_ref[...], preferred_element_type=f32)   # (TBC, 3W)
    x1b = x1.astype(bf16)
    x2b = x2.astype(bf16)

    # Block-diagonal channel-mix weights (BN scale folded), one matmul per tap.
    h_att = jnp.dot(w1_ref[0], x1b[:, 0:H], preferred_element_type=f32)
    w_att = jnp.dot(w2_ref[0], x2b[:, 0:W], preferred_element_type=f32)
    for d in (1, 2):
        h_att = h_att + jnp.dot(w1_ref[d], x1b[:, d * H:(d + 1) * H],
                                preferred_element_type=f32)
        w_att = w_att + jnp.dot(w2_ref[d], x2b[:, d * W:(d + 1) * W],
                                preferred_element_type=f32)

    # Expand (TBC, H)/(TBC, W) back to lane-dense (TBC, HW) on the MXU.
    hexp = jnp.dot(h_att.astype(bf16), eh_ref[...], preferred_element_type=f32)
    wexp = jnp.dot(w_att.astype(bf16), ew_ref[...], preferred_element_type=f32)

    # -------- SpatialAttention: dilated 3x3 convs via lane rolls + masks --------
    avg_f = jnp.mean(x3, axis=1)                  # (TB, HW)
    max_f = jnp.max(x3, axis=1)                   # (TB, HW)
    comb = jnp.concatenate([avg_f, max_f], axis=0)   # (2*TB, HW) sublane-stacked

    deltas = [2 * (i - 1) * W + 2 * (j - 1) for i in range(3) for j in range(3)]

    def shifted(plane, delta):
        # out[:, p] = plane[:, p + delta]; wrap-around positions are killed by the
        # validity masks folded into wsp1/wsp2.
        if delta == 0:
            return plane
        return pltpu.roll(plane, (-delta) % HW, axis=1)

    acc1 = wsp1_ref[0] * shifted(comb, deltas[0])
    for t in range(1, 9):
        acc1 = acc1 + wsp1_ref[t] * shifted(comb, deltas[t])
    d1 = acc1[:TB] + acc1[TB:]                    # (TB, HW)

    acc2 = wsp2_ref[0] * shifted(d1, deltas[0])   # BN scale folded into wsp2
    for t in range(1, 9):
        acc2 = acc2 + wsp2_ref[t] * shifted(d1, deltas[t])

    # ---------------- Fusion (lane-dense (TB, C, HW)) ----------------
    fsum = ((hexp + wexp).reshape(TB, C, HW)
            + acc2[:, None, :]                    # spatial attention, bcast over C
            + bias_ref[...][None, :, :])          # all BN biases, bcast over TB,HW
    fusion = jax.nn.sigmoid(fsum)
    out_ref[...] = x3 + x3 * fusion


def make_params(key, C):
    ks = jax.random.split(key, 10)
    eps = 1e-5
    # PyTorch-layout (OIHW) conv weights, deterministic synthetic init.
    w1 = 0.3 * jax.random.normal(ks[0], (C, C, 3, 1), jnp.float32)   # conv1 (3,1)
    w2 = 0.3 * jax.random.normal(ks[1], (C, C, 1, 3), jnp.float32)   # conv2 (1,3)
    wd1 = 0.3 * jax.random.normal(ks[2], (1, 2, 3, 3), jnp.float32)  # dilated_conv_1
    wd2 = 0.3 * jax.random.normal(ks[3], (1, 1, 3, 3), jnp.float32)  # dilated_conv_2
    # BatchNorm (eval): running_mean=0, running_var=1, random gamma/beta; fold.
    g1 = 1.0 + 0.1 * jax.random.normal(ks[4], (C,), jnp.float32)
    be1 = 0.1 * jax.random.normal(ks[5], (C,), jnp.float32)
    g2 = 1.0 + 0.1 * jax.random.normal(ks[6], (C,), jnp.float32)
    be2 = 0.1 * jax.random.normal(ks[7], (C,), jnp.float32)
    gs = 1.0 + 0.1 * jax.random.normal(ks[8], (), jnp.float32)
    bes = 0.1 * jax.random.normal(ks[9], (), jnp.float32)
    inv = 1.0 / jnp.sqrt(1.0 + eps)
    return dict(w1=w1, w2=w2, wd1=wd1, wd2=wd2,
                s1=g1 * inv, b1=be1, s2=g2 * inv, b2=be2,
                sbn=gs * inv, bbn=bes)


def _pick_tb(B):
    for tb in (8, 4, 2, 1):
        if tb <= B and B % tb == 0:
            return tb
    return 1


def _fold_operands(p, C, H, W, TB):
    """Fold BN + conv weights into matmul / mask operands (wrapper-side JAX)."""
    f32 = jnp.float32
    bf16 = jnp.bfloat16
    HW = H * W
    # Channel-mix conv taps (BN scale folded), block-diagonal over the TB batches
    # in a grid step so the mix stays a plain 2-D matmul on (TB*C, ...) operands.
    eye_tb = jnp.eye(TB, dtype=f32)
    w1blk = jnp.stack([jnp.kron(eye_tb, p['s1'][:, None] * p['w1'][:, :, d, 0])
                       for d in range(3)]).astype(bf16)          # (3, TB*C, TB*C)
    w2blk = jnp.stack([jnp.kron(eye_tb, p['s2'][:, None] * p['w2'][:, :, 0, d])
                       for d in range(3)]).astype(bf16)
    # All additive BN terms collapse into one per-channel bias of the fusion sum.
    bias = (p['b1'] + p['b2'] + p['bbn']).reshape(C, 1).astype(f32)
    # Pooling matrices with the conv-tap shifts folded in.
    ph = jnp.repeat(jnp.eye(H, dtype=f32), W, axis=0) / W        # (HW, H) mean over W
    pw = jnp.tile(jnp.eye(W, dtype=f32), (H, 1)) / H             # (HW, W) mean over H
    sh = [jnp.eye(H, k=-(d - 1), dtype=f32) for d in range(3)]   # tap offsets -1,0,+1
    sw = [jnp.eye(W, k=-(d - 1), dtype=f32) for d in range(3)]
    ph3 = jnp.concatenate([ph @ s for s in sh], axis=1).astype(bf16)   # (HW, 3H)
    pw3 = jnp.concatenate([pw @ s for s in sw], axis=1).astype(bf16)   # (HW, 3W)
    # Expansion matrices: broadcast (.., H)/(.., W) back to lane-dense (.., HW).
    eh = jnp.repeat(jnp.eye(H, dtype=f32), W, axis=0).T.astype(bf16)   # (H, HW)
    ew = jnp.tile(jnp.eye(W, dtype=f32), (H, 1)).T.astype(bf16)        # (W, HW)
    # Dilated-conv taps: fold tap weight (and spatial BN scale) into validity
    # masks that also kill pltpu.roll wrap-around; pre-broadcast over TB rows.
    hh = jnp.arange(H)[:, None]
    ww = jnp.arange(W)[None, :]
    valid = []
    for i in range(3):
        for j in range(3):
            di, dj = 2 * (i - 1), 2 * (j - 1)
            v = ((hh + di >= 0) & (hh + di < H) & (ww + dj >= 0) & (ww + dj < W))
            valid.append(v.astype(f32).reshape(HW))
    v9 = jnp.stack(valid)                                        # (9, HW)
    wma = p['wd1'][0, 0].reshape(9, 1) * v9                      # avg-channel taps
    wmm = p['wd1'][0, 1].reshape(9, 1) * v9                      # max-channel taps
    wm2 = (p['sbn'] * p['wd2'][0, 0]).reshape(9, 1) * v9         # 2nd conv, BN folded
    wsp1 = jnp.concatenate([jnp.repeat(wma[:, None, :], TB, axis=1),
                            jnp.repeat(wmm[:, None, :], TB, axis=1)],
                           axis=1)                               # (9, 2*TB, HW)
    wsp2 = jnp.repeat(wm2[:, None, :], TB, axis=1)               # (9, TB, HW)
    return ph3, pw3, w1blk, w2blk, eh, ew, bias, wsp1, wsp2


def cam_forward(x, p):
    B, C, H, W = x.shape
    HW = H * W
    TB = _pick_tb(B)
    ops = _fold_operands(p, C, H, W, TB)
    x_flat = x.reshape(B, C, HW)                                 # lane-dense layout

    def const_spec(shape):                                       # whole-array block
        return pl.BlockSpec(shape, lambda b, _s=shape: (0,) * len(_s))

    kernel = functools.partial(cam_kernel, H=H, W=W)
    out = pl.pallas_call(
        kernel,
        out_shape=jax.ShapeDtypeStruct((B, C, HW), jnp.float32),
        grid=(B // TB,),
        in_specs=[
            pl.BlockSpec((TB, C, HW), lambda b: (b, 0, 0)),      # x: TB batches/step
            const_spec((HW, 3 * H)), const_spec((HW, 3 * W)),    # pooled-shift mats
            const_spec((3, TB * C, TB * C)),                     # block-diag conv1
            const_spec((3, TB * C, TB * C)),                     # block-diag conv2
            const_spec((H, HW)), const_spec((W, HW)),            # expansion matrices
            const_spec((C, 1)),                                  # fused BN bias
            const_spec((9, 2 * TB, HW)),                         # dilated conv 1 taps
            const_spec((9, TB, HW)),                             # dilated conv 2 taps
        ],
        out_specs=pl.BlockSpec((TB, C, HW), lambda b: (b, 0, 0)),
        compiler_params=pltpu.CompilerParams(
            dimension_semantics=("parallel",)),
    )(x_flat, *ops)
    return out.reshape(B, C, H, W)


def ref_forward(x, p):
    """Pure-JAX reference mirroring the PyTorch forward (eval-mode BN)."""
    dn = ('NCHW', 'OIHW', 'NCHW')
    x1 = jnp.mean(x, axis=3, keepdims=True)
    x1 = lax.conv_general_dilated(x1, p['w1'], (1, 1), [(1, 1), (0, 0)],
                                  dimension_numbers=dn)
    x1 = x1 * p['s1'][None, :, None, None] + p['b1'][None, :, None, None]
    x2 = jnp.mean(x, axis=2, keepdims=True)
    x2 = lax.conv_general_dilated(x2, p['w2'], (1, 1), [(0, 0), (1, 1)],
                                  dimension_numbers=dn)
    x2 = x2 * p['s2'][None, :, None, None] + p['b2'][None, :, None, None]
    avg = jnp.mean(x, axis=1, keepdims=True)
    mx = jnp.max(x, axis=1, keepdims=True)
    comb = jnp.concatenate([avg, mx], axis=1)
    d1 = lax.conv_general_dilated(comb, p['wd1'], (1, 1), [(2, 2), (2, 2)],
                                  rhs_dilation=(2, 2), dimension_numbers=dn)
    d2 = lax.conv_general_dilated(d1, p['wd2'], (1, 1), [(2, 2), (2, 2)],
                                  rhs_dilation=(2, 2), dimension_numbers=dn)
    c = d2 * p['sbn'] + p['bbn']
    fusion = jax.nn.sigmoid(x2 + x1 + c)
    return x * fusion + x


if __name__ == "__main__":
    key = jax.random.PRNGKey(0)
    kx, kp = jax.random.split(key)
    B, C, H, W = 2, 4, 16, 16
    x = jax.random.normal(kx, (B, C, H, W), jnp.float32)
    params = make_params(kp, C)

    ref = ref_forward(x, params)

    out = cam_forward(x, params)
    jax.block_until_ready(out)

    # Tolerance budgets for the bf16 MXU operands (f32 accumulation) vs. the XLA
    # f32 reference; genuine indexing/mask bugs would be orders of magnitude larger.
    np.testing.assert_allclose(np.asarray(out), np.asarray(ref),
                               rtol=2e-2, atol=1e-2)
    print("KERNEL_OK")
</pallas_src>

<mosaic_0001>
module attributes {stable_mosaic.version = 11 : i64} {
  func.func @cam_kernel(%arg0: i32, %arg1: memref<2x4x256xf32, #tpu.memory_space<vmem>>, %arg2: memref<256x48xbf16, #tpu.memory_space<vmem>>, %arg3: memref<256x48xbf16, #tpu.memory_space<vmem>>, %arg4: memref<3x8x8xbf16, #tpu.memory_space<vmem>>, %arg5: memref<3x8x8xbf16, #tpu.memory_space<vmem>>, %arg6: memref<16x256xbf16, #tpu.memory_space<vmem>>, %arg7: memref<16x256xbf16, #tpu.memory_space<vmem>>, %arg8: memref<4x1xf32, #tpu.memory_space<vmem>>, %arg9: memref<9x4x256xf32, #tpu.memory_space<vmem>>, %arg10: memref<9x2x256xf32, #tpu.memory_space<vmem>>, %arg11: memref<2x4x256xf32, #tpu.memory_space<vmem>>) attributes {dimension_semantics = [#tpu.dimension_semantics<parallel>], iteration_bounds = array<i64: 1>, scalar_prefetch = 0 : i64, scratch_operands = 0 : i64, tpu.core_type = #tpu.core_type<tc>, window_params = [{transform_indices = @transform_0, window_bounds = array<i64: 2, 4, 256>}, {pipeline_mode = #tpu.pipeline_mode<synchronous>, transform_indices = @transform_1, window_bounds = array<i64: 256, 48>}, {pipeline_mode = #tpu.pipeline_mode<synchronous>, transform_indices = @transform_2, window_bounds = array<i64: 256, 48>}, {pipeline_mode = #tpu.pipeline_mode<synchronous>, transform_indices = @transform_3, window_bounds = array<i64: 3, 8, 8>}, {pipeline_mode = #tpu.pipeline_mode<synchronous>, transform_indices = @transform_4, window_bounds = array<i64: 3, 8, 8>}, {pipeline_mode = #tpu.pipeline_mode<synchronous>, transform_indices = @transform_5, window_bounds = array<i64: 16, 256>}, {pipeline_mode = #tpu.pipeline_mode<synchronous>, transform_indices = @transform_6, window_bounds = array<i64: 16, 256>}, {pipeline_mode = #tpu.pipeline_mode<synchronous>, transform_indices = @transform_7, window_bounds = array<i64: 4, 1>}, {pipeline_mode = #tpu.pipeline_mode<synchronous>, transform_indices = @transform_8, window_bounds = array<i64: 9, 4, 256>}, {pipeline_mode = #tpu.pipeline_mode<synchronous>, transform_indices = @transform_9, window_bounds = array<i64: 9, 2, 256>}, {transform_indices = @transform_10, window_bounds = array<i64: 2, 4, 256>}]} {
    %c0 = arith.constant 0 : index
    %c0_0 = arith.constant 0 : index
    %c0_1 = arith.constant 0 : index
    %0 = vector.load %arg1[%c0, %c0_0, %c0_1] : memref<2x4x256xf32, #tpu.memory_space<vmem>>, vector<2x4x256xf32>
    %1 = vector.shape_cast %0 : vector<2x4x256xf32> to vector<8x256xf32>
    %2 = arith.truncf %1 : vector<8x256xf32> to vector<8x256xbf16>
    %c0_2 = arith.constant 0 : index
    %c0_3 = arith.constant 0 : index
    %3 = vector.load %arg2[%c0_2, %c0_3] : memref<256x48xbf16, #tpu.memory_space<vmem>>, vector<256x48xbf16>
    %cst = arith.constant dense<0.000000e+00> : vector<8x48xf32>
    %4 = tpu.matmul %2, %3, %cst {dimension_numbers = #tpu.dot_dimension_numbers<[1], [0], [0], [1], [0, 0, 1, 1], [], []>} : vector<8x256xbf16>, vector<256x48xbf16>, vector<8x48xf32> -> vector<8x48xf32>
    %c0_4 = arith.constant 0 : index
    %c0_5 = arith.constant 0 : index
    %5 = vector.load %arg3[%c0_4, %c0_5] : memref<256x48xbf16, #tpu.memory_space<vmem>>, vector<256x48xbf16>
    %cst_6 = arith.constant dense<0.000000e+00> : vector<8x48xf32>
    %6 = tpu.matmul %2, %5, %cst_6 {dimension_numbers = #tpu.dot_dimension_numbers<[1], [0], [0], [1], [0, 0, 1, 1], [], []>} : vector<8x256xbf16>, vector<256x48xbf16>, vector<8x48xf32> -> vector<8x48xf32>
    %7 = arith.truncf %4 : vector<8x48xf32> to vector<8x48xbf16>
    %8 = arith.truncf %6 : vector<8x48xf32> to vector<8x48xbf16>
    %c0_7 = arith.constant 0 : index
    %c0_8 = arith.constant 0 : index
    %c0_9 = arith.constant 0 : index
    %9 = vector.load %arg4[%c0_7, %c0_8, %c0_9] : memref<3x8x8xbf16, #tpu.memory_space<vmem>>, vector<1x8x8xbf16>
    %10 = vector.shape_cast %9 : vector<1x8x8xbf16> to vector<8x8xbf16>
    %11 = vector.extract_strided_slice %7 {offsets = [0, 0], sizes = [8, 16], strides = [1, 1]} : vector<8x48xbf16> to vector<8x16xbf16>
    %cst_10 = arith.constant dense<0.000000e+00> : vector<8x16xf32>
    %12 = tpu.matmul %10, %11, %cst_10 {dimension_numbers = #tpu.dot_dimension_numbers<[1], [0], [0], [1], [0, 0, 1, 1], [], []>} : vector<8x8xbf16>, vector<8x16xbf16>, vector<8x16xf32> -> vector<8x16xf32>
    %c0_11 = arith.constant 0 : index
    %c0_12 = arith.constant 0 : index
    %c0_13 = arith.constant 0 : index
    %13 = vector.load %arg5[%c0_11, %c0_12, %c0_13] : memref<3x8x8xbf16, #tpu.memory_space<vmem>>, vector<1x8x8xbf16>
    %14 = vector.shape_cast %13 : vector<1x8x8xbf16> to vector<8x8xbf16>
    %15 = vector.extract_strided_slice %8 {offsets = [0, 0], sizes = [8, 16], strides = [1, 1]} : vector<8x48xbf16> to vector<8x16xbf16>
    %cst_14 = arith.constant dense<0.000000e+00> : vector<8x16xf32>
    %16 = tpu.matmul %14, %15, %cst_14 {dimension_numbers = #tpu.dot_dimension_numbers<[1], [0], [0], [1], [0, 0, 1, 1], [], []>} : vector<8x8xbf16>, vector<8x16xbf16>, vector<8x16xf32> -> vector<8x16xf32>
    %c1 = arith.constant 1 : index
    %c0_15 = arith.constant 0 : index
    %c0_16 = arith.constant 0 : index
    %17 = vector.load %arg4[%c1, %c0_15, %c0_16] : memref<3x8x8xbf16, #tpu.memory_space<vmem>>, vector<1x8x8xbf16>
    %18 = vector.shape_cast %17 : vector<1x8x8xbf16> to vector<8x8xbf16>
    %19 = vector.extract_strided_slice %7 {offsets = [0, 16], sizes = [8, 16], strides = [1, 1]} : vector<8x48xbf16> to vector<8x16xbf16>
    %cst_17 = arith.constant dense<0.000000e+00> : vector<8x16xf32>
    %20 = tpu.matmul %18, %19, %cst_17 {dimension_numbers = #tpu.dot_dimension_numbers<[1], [0], [0], [1], [0, 0, 1, 1], [], []>} : vector<8x8xbf16>, vector<8x16xbf16>, vector<8x16xf32> -> vector<8x16xf32>
    %21 = arith.addf %12, %20 : vector<8x16xf32>
    %c1_18 = arith.constant 1 : index
    %c0_19 = arith.constant 0 : index
    %c0_20 = arith.constant 0 : index
    %22 = vector.load %arg5[%c1_18, %c0_19, %c0_20] : memref<3x8x8xbf16, #tpu.memory_space<vmem>>, vector<1x8x8xbf16>
    %23 = vector.shape_cast %22 : vector<1x8x8xbf16> to vector<8x8xbf16>
    %24 = vector.extract_strided_slice %8 {offsets = [0, 16], sizes = [8, 16], strides = [1, 1]} : vector<8x48xbf16> to vector<8x16xbf16>
    %cst_21 = arith.constant dense<0.000000e+00> : vector<8x16xf32>
    %25 = tpu.matmul %23, %24, %cst_21 {dimension_numbers = #tpu.dot_dimension_numbers<[1], [0], [0], [1], [0, 0, 1, 1], [], []>} : vector<8x8xbf16>, vector<8x16xbf16>, vector<8x16xf32> -> vector<8x16xf32>
    %26 = arith.addf %16, %25 : vector<8x16xf32>
    %c2 = arith.constant 2 : index
    %c0_22 = arith.constant 0 : index
    %c0_23 = arith.constant 0 : index
    %27 = vector.load %arg4[%c2, %c0_22, %c0_23] : memref<3x8x8xbf16, #tpu.memory_space<vmem>>, vector<1x8x8xbf16>
    %28 = vector.shape_cast %27 : vector<1x8x8xbf16> to vector<8x8xbf16>
    %29 = vector.extract_strided_slice %7 {offsets = [0, 32], sizes = [8, 16], strides = [1, 1]} : vector<8x48xbf16> to vector<8x16xbf16>
    %cst_24 = arith.constant dense<0.000000e+00> : vector<8x16xf32>
    %30 = tpu.matmul %28, %29, %cst_24 {dimension_numbers = #tpu.dot_dimension_numbers<[1], [0], [0], [1], [0, 0, 1, 1], [], []>} : vector<8x8xbf16>, vector<8x16xbf16>, vector<8x16xf32> -> vector<8x16xf32>
    %31 = arith.addf %21, %30 : vector<8x16xf32>
    %c2_25 = arith.constant 2 : index
    %c0_26 = arith.constant 0 : index
    %c0_27 = arith.constant 0 : index
    %32 = vector.load %arg5[%c2_25, %c0_26, %c0_27] : memref<3x8x8xbf16, #tpu.memory_space<vmem>>, vector<1x8x8xbf16>
    %33 = vector.shape_cast %32 : vector<1x8x8xbf16> to vector<8x8xbf16>
    %34 = vector.extract_strided_slice %8 {offsets = [0, 32], sizes = [8, 16], strides = [1, 1]} : vector<8x48xbf16> to vector<8x16xbf16>
    %cst_28 = arith.constant dense<0.000000e+00> : vector<8x16xf32>
    %35 = tpu.matmul %33, %34, %cst_28 {dimension_numbers = #tpu.dot_dimension_numbers<[1], [0], [0], [1], [0, 0, 1, 1], [], []>} : vector<8x8xbf16>, vector<8x16xbf16>, vector<8x16xf32> -> vector<8x16xf32>
    %36 = arith.addf %26, %35 : vector<8x16xf32>
    %37 = arith.truncf %31 : vector<8x16xf32> to vector<8x16xbf16>
    %c0_29 = arith.constant 0 : index
    %c0_30 = arith.constant 0 : index
    %38 = vector.load %arg6[%c0_29, %c0_30] : memref<16x256xbf16, #tpu.memory_space<vmem>>, vector<16x256xbf16>
    %cst_31 = arith.constant dense<0.000000e+00> : vector<8x256xf32>
    %39 = tpu.matmul %37, %38, %cst_31 {dimension_numbers = #tpu.dot_dimension_numbers<[1], [0], [0], [1], [0, 0, 1, 1], [], []>} : vector<8x16xbf16>, vector<16x256xbf16>, vector<8x256xf32> -> vector<8x256xf32>
    %40 = arith.truncf %36 : vector<8x16xf32> to vector<8x16xbf16>
    %c0_32 = arith.constant 0 : index
    %c0_33 = arith.constant 0 : index
    %41 = vector.load %arg7[%c0_32, %c0_33] : memref<16x256xbf16, #tpu.memory_space<vmem>>, vector<16x256xbf16>
    %cst_34 = arith.constant dense<0.000000e+00> : vector<8x256xf32>
    %42 = tpu.matmul %40, %41, %cst_34 {dimension_numbers = #tpu.dot_dimension_numbers<[1], [0], [0], [1], [0, 0, 1, 1], [], []>} : vector<8x16xbf16>, vector<16x256xbf16>, vector<8x256xf32> -> vector<8x256xf32>
    %cst_35 = arith.constant dense<0.000000e+00> : vector<2x256xf32>
    %43 = vector.multi_reduction <add>, %0, %cst_35 [1] : vector<2x4x256xf32> to vector<2x256xf32>
    %cst_36 = arith.constant 4.000000e+00 : f32
    %44 = vector.broadcast %cst_36 : f32 to vector<2x256xf32>
    %45 = arith.divf %43, %44 : vector<2x256xf32>
    %cst_37 = arith.constant dense<0xFF800000> : vector<2x256xf32>
    %46 = vector.multi_reduction <maximumf>, %0, %cst_37 [1] : vector<2x4x256xf32> to vector<2x256xf32>
    %47 = tpu.concatenate %45, %46 in 0 : vector<2x256xf32>, vector<2x256xf32> -> vector<4x256xf32>
    %c0_38 = arith.constant 0 : index
    %c0_39 = arith.constant 0 : index
    %c0_40 = arith.constant 0 : index
    %48 = vector.load %arg9[%c0_38, %c0_39, %c0_40] : memref<9x4x256xf32, #tpu.memory_space<vmem>>, vector<1x4x256xf32>
    %49 = vector.shape_cast %48 : vector<1x4x256xf32> to vector<4x256xf32>
    %c34_i32 = arith.constant 34 : i32
    %50 = tpu.dynamic_rotate %47 by %c34_i32 dim 1 : vector<4x256xf32>, i32 -> vector<4x256xf32>
    %51 = arith.mulf %49, %50 : vector<4x256xf32>
    %c1_41 = arith.constant 1 : index
    %c0_42 = arith.constant 0 : index
    %c0_43 = arith.constant 0 : index
    %52 = vector.load %arg9[%c1_41, %c0_42, %c0_43] : memref<9x4x256xf32, #tpu.memory_space<vmem>>, vector<1x4x256xf32>
    %53 = vector.shape_cast %52 : vector<1x4x256xf32> to vector<4x256xf32>
    %c32_i32 = arith.constant 32 : i32
    %54 = tpu.dynamic_rotate %47 by %c32_i32 dim 1 : vector<4x256xf32>, i32 -> vector<4x256xf32>
    %55 = arith.mulf %53, %54 : vector<4x256xf32>
    %56 = arith.addf %51, %55 : vector<4x256xf32>
    %c2_44 = arith.constant 2 : index
    %c0_45 = arith.constant 0 : index
    %c0_46 = arith.constant 0 : index
    %57 = vector.load %arg9[%c2_44, %c0_45, %c0_46] : memref<9x4x256xf32, #tpu.memory_space<vmem>>, vector<1x4x256xf32>
    %58 = vector.shape_cast %57 : vector<1x4x256xf32> to vector<4x256xf32>
    %c30_i32 = arith.constant 30 : i32
    %59 = tpu.dynamic_rotate %47 by %c30_i32 dim 1 : vector<4x256xf32>, i32 -> vector<4x256xf32>
    %60 = arith.mulf %58, %59 : vector<4x256xf32>
    %61 = arith.addf %56, %60 : vector<4x256xf32>
    %c3 = arith.constant 3 : index
    %c0_47 = arith.constant 0 : index
    %c0_48 = arith.constant 0 : index
    %62 = vector.load %arg9[%c3, %c0_47, %c0_48] : memref<9x4x256xf32, #tpu.memory_space<vmem>>, vector<1x4x256xf32>
    %63 = vector.shape_cast %62 : vector<1x4x256xf32> to vector<4x256xf32>
    %c2_i32 = arith.constant 2 : i32
    %64 = tpu.dynamic_rotate %47 by %c2_i32 dim 1 : vector<4x256xf32>, i32 -> vector<4x256xf32>
    %65 = arith.mulf %63, %64 : vector<4x256xf32>
    %66 = arith.addf %61, %65 : vector<4x256xf32>
    %c4 = arith.constant 4 : index
    %c0_49 = arith.constant 0 : index
    %c0_50 = arith.constant 0 : index
    %67 = vector.load %arg9[%c4, %c0_49, %c0_50] : memref<9x4x256xf32, #tpu.memory_space<vmem>>, vector<1x4x256xf32>
    %68 = vector.shape_cast %67 : vector<1x4x256xf32> to vector<4x256xf32>
    %69 = arith.mulf %68, %47 : vector<4x256xf32>
    %70 = arith.addf %66, %69 : vector<4x256xf32>
    %c5 = arith.constant 5 : index
    %c0_51 = arith.constant 0 : index
    %c0_52 = arith.constant 0 : index
    %71 = vector.load %arg9[%c5, %c0_51, %c0_52] : memref<9x4x256xf32, #tpu.memory_space<vmem>>, vector<1x4x256xf32>
    %72 = vector.shape_cast %71 : vector<1x4x256xf32> to vector<4x256xf32>
    %c254_i32 = arith.constant 254 : i32
    %73 = tpu.dynamic_rotate %47 by %c254_i32 dim 1 : vector<4x256xf32>, i32 -> vector<4x256xf32>
    %74 = arith.mulf %72, %73 : vector<4x256xf32>
    %75 = arith.addf %70, %74 : vector<4x256xf32>
    %c6 = arith.constant 6 : index
    %c0_53 = arith.constant 0 : index
    %c0_54 = arith.constant 0 : index
    %76 = vector.load %arg9[%c6, %c0_53, %c0_54] : memref<9x4x256xf32, #tpu.memory_space<vmem>>, vector<1x4x256xf32>
    %77 = vector.shape_cast %76 : vector<1x4x256xf32> to vector<4x256xf32>
    %c226_i32 = arith.constant 226 : i32
    %78 = tpu.dynamic_rotate %47 by %c226_i32 dim 1 : vector<4x256xf32>, i32 -> vector<4x256xf32>
    %79 = arith.mulf %77, %78 : vector<4x256xf32>
    %80 = arith.addf %75, %79 : vector<4x256xf32>
    %c7 = arith.constant 7 : index
    %c0_55 = arith.constant 0 : index
    %c0_56 = arith.constant 0 : index
    %81 = vector.load %arg9[%c7, %c0_55, %c0_56] : memref<9x4x256xf32, #tpu.memory_space<vmem>>, vector<1x4x256xf32>
    %82 = vector.shape_cast %81 : vector<1x4x256xf32> to vector<4x256xf32>
    %c224_i32 = arith.constant 224 : i32
    %83 = tpu.dynamic_rotate %47 by %c224_i32 dim 1 : vector<4x256xf32>, i32 -> vector<4x256xf32>
    %84 = arith.mulf %82, %83 : vector<4x256xf32>
    %85 = arith.addf %80, %84 : vector<4x256xf32>
    %c8 = arith.constant 8 : index
    %c0_57 = arith.constant 0 : index
    %c0_58 = arith.constant 0 : index
    %86 = vector.load %arg9[%c8, %c0_57, %c0_58] : memref<9x4x256xf32, #tpu.memory_space<vmem>>, vector<1x4x256xf32>
    %87 = vector.shape_cast %86 : vector<1x4x256xf32> to vector<4x256xf32>
    %c222_i32 = arith.constant 222 : i32
    %88 = tpu.dynamic_rotate %47 by %c222_i32 dim 1 : vector<4x256xf32>, i32 -> vector<4x256xf32>
    %89 = arith.mulf %87, %88 : vector<4x256xf32>
    %90 = arith.addf %85, %89 : vector<4x256xf32>
    %91 = vector.extract_strided_slice %90 {offsets = [0, 0], sizes = [2, 256], strides = [1, 1]} : vector<4x256xf32> to vector<2x256xf32>
    %92 = vector.extract_strided_slice %90 {offsets = [2, 0], sizes = [2, 256], strides = [1, 1]} : vector<4x256xf32> to vector<2x256xf32>
    %93 = arith.addf %91, %92 : vector<2x256xf32>
    %c0_59 = arith.constant 0 : index
    %c0_60 = arith.constant 0 : index
    %c0_61 = arith.constant 0 : index
    %94 = vector.load %arg10[%c0_59, %c0_60, %c0_61] : memref<9x2x256xf32, #tpu.memory_space<vmem>>, vector<1x2x256xf32>
    %95 = vector.shape_cast %94 : vector<1x2x256xf32> to vector<2x256xf32>
    %c34_i32_62 = arith.constant 34 : i32
    %96 = tpu.dynamic_rotate %93 by %c34_i32_62 dim 1 : vector<2x256xf32>, i32 -> vector<2x256xf32>
    %97 = arith.mulf %95, %96 : vector<2x256xf32>
    %c1_63 = arith.constant 1 : index
    %c0_64 = arith.constant 0 : index
    %c0_65 = arith.constant 0 : index
    %98 = vector.load %arg10[%c1_63, %c0_64, %c0_65] : memref<9x2x256xf32, #tpu.memory_space<vmem>>, vector<1x2x256xf32>
    %99 = vector.shape_cast %98 : vector<1x2x256xf32> to vector<2x256xf32>
    %c32_i32_66 = arith.constant 32 : i32
    %100 = tpu.dynamic_rotate %93 by %c32_i32_66 dim 1 : vector<2x256xf32>, i32 -> vector<2x256xf32>
    %101 = arith.mulf %99, %100 : vector<2x256xf32>
    %102 = arith.addf %97, %101 : vector<2x256xf32>
    %c2_67 = arith.constant 2 : index
    %c0_68 = arith.constant 0 : index
    %c0_69 = arith.constant 0 : index
    %103 = vector.load %arg10[%c2_67, %c0_68, %c0_69] : memref<9x2x256xf32, #tpu.memory_space<vmem>>, vector<1x2x256xf32>
    %104 = vector.shape_cast %103 : vector<1x2x256xf32> to vector<2x256xf32>
    %c30_i32_70 = arith.constant 30 : i32
    %105 = tpu.dynamic_rotate %93 by %c30_i32_70 dim 1 : vector<2x256xf32>, i32 -> vector<2x256xf32>
    %106 = arith.mulf %104, %105 : vector<2x256xf32>
    %107 = arith.addf %102, %106 : vector<2x256xf32>
    %c3_71 = arith.constant 3 : index
    %c0_72 = arith.constant 0 : index
    %c0_73 = arith.constant 0 : index
    %108 = vector.load %arg10[%c3_71, %c0_72, %c0_73] : memref<9x2x256xf32, #tpu.memory_space<vmem>>, vector<1x2x256xf32>
    %109 = vector.shape_cast %108 : vector<1x2x256xf32> to vector<2x256xf32>
    %c2_i32_74 = arith.constant 2 : i32
    %110 = tpu.dynamic_rotate %93 by %c2_i32_74 dim 1 : vector<2x256xf32>, i32 -> vector<2x256xf32>
    %111 = arith.mulf %109, %110 : vector<2x256xf32>
    %112 = arith.addf %107, %111 : vector<2x256xf32>
    %c4_75 = arith.constant 4 : index
    %c0_76 = arith.constant 0 : index
    %c0_77 = arith.constant 0 : index
    %113 = vector.load %arg10[%c4_75, %c0_76, %c0_77] : memref<9x2x256xf32, #tpu.memory_space<vmem>>, vector<1x2x256xf32>
    %114 = vector.shape_cast %113 : vector<1x2x256xf32> to vector<2x256xf32>
    %115 = arith.mulf %114, %93 : vector<2x256xf32>
    %116 = arith.addf %112, %115 : vector<2x256xf32>
    %c5_78 = arith.constant 5 : index
    %c0_79 = arith.constant 0 : index
    %c0_80 = arith.constant 0 : index
    %117 = vector.load %arg10[%c5_78, %c0_79, %c0_80] : memref<9x2x256xf32, #tpu.memory_space<vmem>>, vector<1x2x256xf32>
    %118 = vector.shape_cast %117 : vector<1x2x256xf32> to vector<2x256xf32>
    %c254_i32_81 = arith.constant 254 : i32
    %119 = tpu.dynamic_rotate %93 by %c254_i32_81 dim 1 : vector<2x256xf32>, i32 -> vector<2x256xf32>
    %120 = arith.mulf %118, %119 : vector<2x256xf32>
    %121 = arith.addf %116, %120 : vector<2x256xf32>
    %c6_82 = arith.constant 6 : index
    %c0_83 = arith.constant 0 : index
    %c0_84 = arith.constant 0 : index
    %122 = vector.load %arg10[%c6_82, %c0_83, %c0_84] : memref<9x2x256xf32, #tpu.memory_space<vmem>>, vector<1x2x256xf32>
    %123 = vector.shape_cast %122 : vector<1x2x256xf32> to vector<2x256xf32>
    %c226_i32_85 = arith.constant 226 : i32
    %124 = tpu.dynamic_rotate %93 by %c226_i32_85 dim 1 : vector<2x256xf32>, i32 -> vector<2x256xf32>
    %125 = arith.mulf %123, %124 : vector<2x256xf32>
    %126 = arith.addf %121, %125 : vector<2x256xf32>
    %c7_86 = arith.constant 7 : index
    %c0_87 = arith.constant 0 : index
    %c0_88 = arith.constant 0 : index
    %127 = vector.load %arg10[%c7_86, %c0_87, %c0_88] : memref<9x2x256xf32, #tpu.memory_space<vmem>>, vector<1x2x256xf32>
    %128 = vector.shape_cast %127 : vector<1x2x256xf32> to vector<2x256xf32>
    %c224_i32_89 = arith.constant 224 : i32
    %129 = tpu.dynamic_rotate %93 by %c224_i32_89 dim 1 : vector<2x256xf32>, i32 -> vector<2x256xf32>
    %130 = arith.mulf %128, %129 : vector<2x256xf32>
    %131 = arith.addf %126, %130 : vector<2x256xf32>
    %c8_90 = arith.constant 8 : index
    %c0_91 = arith.constant 0 : index
    %c0_92 = arith.constant 0 : index
    %132 = vector.load %arg10[%c8_90, %c0_91, %c0_92] : memref<9x2x256xf32, #tpu.memory_space<vmem>>, vector<1x2x256xf32>
    %133 = vector.shape_cast %132 : vector<1x2x256xf32> to vector<2x256xf32>
    %c222_i32_93 = arith.constant 222 : i32
    %134 = tpu.dynamic_rotate %93 by %c222_i32_93 dim 1 : vector<2x256xf32>, i32 -> vector<2x256xf32>
    %135 = arith.mulf %133, %134 : vector<2x256xf32>
    %136 = arith.addf %131, %135 : vector<2x256xf32>
    %137 = arith.addf %39, %42 : vector<8x256xf32>
    %138 = vector.shape_cast %137 : vector<8x256xf32> to vector<2x4x256xf32>
    %139 = vector.shape_cast %136 : vector<2x256xf32> to vector<2x1x256xf32>
    %140 = vector.broadcast %139 : vector<2x1x256xf32> to vector<2x4x256xf32>
    %141 = arith.addf %138, %140 : vector<2x4x256xf32>
    %c0_94 = arith.constant 0 : index
    %c0_95 = arith.constant 0 : index
    %142 = vector.load %arg8[%c0_94, %c0_95] : memref<4x1xf32, #tpu.memory_space<vmem>>, vector<4x1xf32>
    %143 = vector.shape_cast %142 : vector<4x1xf32> to vector<1x4x1xf32>
    %144 = vector.broadcast %143 : vector<1x4x1xf32> to vector<2x4x256xf32>
    %145 = arith.addf %141, %144 : vector<2x4x256xf32>
    %146 = arith.negf %145 : vector<2x4x256xf32>
    %147 = math.exp %146 : vector<2x4x256xf32>
    %cst_96 = arith.constant 1.000000e+00 : f32
    %148 = vector.broadcast %cst_96 : f32 to vector<2x4x256xf32>
    %149 = arith.addf %148, %147 : vector<2x4x256xf32>
    %150 = arith.divf %148, %149 : vector<2x4x256xf32>
    %151 = arith.mulf %0, %150 : vector<2x4x256xf32>
    %152 = arith.addf %0, %151 : vector<2x4x256xf32>
    %c0_97 = arith.constant 0 : index
    %c0_98 = arith.constant 0 : index
    %c0_99 = arith.constant 0 : index
    %153 = vector.load %arg11[%c0_97, %c0_98, %c0_99] : memref<2x4x256xf32, #tpu.memory_space<vmem>>, vector<2x4x256xf32>
    tpu.vector_store %arg11[%c0_97, %c0_98, %c0_99], %152 {strides = array<i32>} : memref<2x4x256xf32, #tpu.memory_space<vmem>>, vector<2x4x256xf32>,
    return
  }
  func.func @transform_0(%arg0: i32) -> (i32, i32, i32) {
    %c0_i32 = arith.constant 0 : i32
    %c0_i32_0 = arith.constant 0 : i32
    %c0_i32_1 = arith.constant 0 : i32
    return %arg0, %c0_i32, %c0_i32_0 : i32, i32, i32
  }
  func.func @transform_1(%arg0: i32) -> (i32, i32) {
    %c0_i32 = arith.constant 0 : i32
    %c0_i32_0 = arith.constant 0 : i32
    %c0_i32_1 = arith.constant 0 : i32
    return %c0_i32, %c0_i32_0 : i32, i32
  }
  func.func @transform_2(%arg0: i32) -> (i32, i32) {
    %c0_i32 = arith.constant 0 : i32
    %c0_i32_0 = arith.constant 0 : i32
    %c0_i32_1 = arith.constant 0 : i32
    return %c0_i32, %c0_i32_0 : i32, i32
  }
  func.func @transform_3(%arg0: i32) -> (i32, i32, i32) {
    %c0_i32 = arith.constant 0 : i32
    %c0_i32_0 = arith.constant 0 : i32
    %c0_i32_1 = arith.constant 0 : i32
    %c0_i32_2 = arith.constant 0 : i32
    return %c0_i32, %c0_i32_0, %c0_i32_1 : i32, i32, i32
  }
  func.func @transform_4(%arg0: i32) -> (i32, i32, i32) {
    %c0_i32 = arith.constant 0 : i32
    %c0_i32_0 = arith.constant 0 : i32
    %c0_i32_1 = arith.constant 0 : i32
    %c0_i32_2 = arith.constant 0 : i32
    return %c0_i32, %c0_i32_0, %c0_i32_1 : i32, i32, i32
  }
  func.func @transform_5(%arg0: i32) -> (i32, i32) {
    %c0_i32 = arith.constant 0 : i32
    %c0_i32_0 = arith.constant 0 : i32
    %c0_i32_1 = arith.constant 0 : i32
    return %c0_i32, %c0_i32_0 : i32, i32
  }
  func.func @transform_6(%arg0: i32) -> (i32, i32) {
    %c0_i32 = arith.constant 0 : i32
    %c0_i32_0 = arith.constant 0 : i32
    %c0_i32_1 = arith.constant 0 : i32
    return %c0_i32, %c0_i32_0 : i32, i32
  }
  func.func @transform_7(%arg0: i32) -> (i32, i32) {
    %c0_i32 = arith.constant 0 : i32
    %c0_i32_0 = arith.constant 0 : i32
    %c0_i32_1 = arith.constant 0 : i32
    return %c0_i32, %c0_i32_0 : i32, i32
  }
  func.func @transform_8(%arg0: i32) -> (i32, i32, i32) {
    %c0_i32 = arith.constant 0 : i32
    %c0_i32_0 = arith.constant 0 : i32
    %c0_i32_1 = arith.constant 0 : i32
    %c0_i32_2 = arith.constant 0 : i32
    return %c0_i32, %c0_i32_0, %c0_i32_1 : i32, i32, i32
  }
  func.func @transform_9(%arg0: i32) -> (i32, i32, i32) {
    %c0_i32 = arith.constant 0 : i32
    %c0_i32_0 = arith.constant 0 : i32
    %c0_i32_1 = arith.constant 0 : i32
    %c0_i32_2 = arith.constant 0 : i32
    return %c0_i32, %c0_i32_0, %c0_i32_1 : i32, i32, i32
  }
  func.func @transform_10(%arg0: i32) -> (i32, i32, i32) {
    %c0_i32 = arith.constant 0 : i32
    %c0_i32_0 = arith.constant 0 : i32
    %c0_i32_1 = arith.constant 0 : i32
    return %arg0, %c0_i32, %c0_i32_0 : i32, i32, i32
  }
}

</mosaic_0001>

<llo_original>
// kernel: tpu_custom_call.1
$region0: #{tpu_custom_call.1}
  #allocation0 [shape = 'u32[]', space=smem, size = 0x4, offset = 0x4, fixed_abs, tag = 'smem constant byte address 0x4 - core index']
  #allocation1 [shape = 'u32[72,128]{1,0:T(1,128)}', space=vmem, size = 0x9000, scoped, tag = 'internal scratch']
  %s0 = inlined_call_operand.vmem [shape: f32[2,4,256], index: 0, kind: input, shape index: {}]
  %s1 = inlined_call_operand.vmem [shape: bf16[256,48], index: 1, kind: input, shape index: {}]
  %s2 = inlined_call_operand.vmem [shape: bf16[256,48], index: 2, kind: input, shape index: {}]
  %s3 = inlined_call_operand.vmem [shape: bf16[3,8,8], index: 3, kind: input, shape index: {}]
  %s4 = inlined_call_operand.vmem [shape: bf16[3,8,8], index: 4, kind: input, shape index: {}]
  %s5 = inlined_call_operand.vmem [shape: bf16[16,256], index: 5, kind: input, shape index: {}]
  %s6 = inlined_call_operand.vmem [shape: bf16[16,256], index: 6, kind: input, shape index: {}]
  %s7 = inlined_call_operand.vmem [shape: f32[4,1], index: 7, kind: input, shape index: {}]
  %s8 = inlined_call_operand.vmem [shape: f32[9,4,256], index: 8, kind: input, shape index: {}]
  %s9 = inlined_call_operand.vmem [shape: f32[9,2,256], index: 9, kind: input, shape index: {}]
  %s10 = inlined_call_operand.hbm [shape: f32[2,4,256], index: 10, kind: output, shape index: {}]
  %s11 = sld [smem:[#allocation0]]
  $region50: #{tpu_custom_call.1} parent=0
    _
  %s13 = ssub.s32 1, %s11
  %s14 = scalar_select 0, %s13, %s11
  $region1: #{tpu_custom_call.1} parent=0
    #allocation2 [shape = 'u8[8192]{0}', space=vmem, size = 0x2000, scoped, tag = 'output window, operand 0, single buffered']
    #allocation3 [shape = 's32[1]{0}', space=sflag, size = 0x4, scoped, tag = 'scoped memory for tpu_custom_call.1']
    %15 = vsyncpa [#allocation3], 0
    // Predicated region
    $region2: #{tpu_custom_call.1} parent=1 // pred_check
      _
    $region3: #{tpu_custom_call.1} parent=1 // pred_check_branch
      %17 = sbr.rel (0) target = $region5
    $region4: #{tpu_custom_call.1} parent=1 // pred_region
      _
    $region5: #{tpu_custom_call.1} parent=1 // pred_fallthru
      _
    // Predicated region
    $region6: #{tpu_custom_call.1} parent=1 // pred_check
      _
    $region7: #{tpu_custom_call.1} parent=1 // pred_check_branch
      %19 = sbr.rel (0) target = $region9
    $region8: #{tpu_custom_call.1} parent=1 // pred_region
      _
    $region9: #{tpu_custom_call.1} parent=1 // pred_fallthru
      _
    // Predicated region
    $region10: #{tpu_custom_call.1} parent=1 // pred_check
      _
    $region11: #{tpu_custom_call.1} parent=1 // pred_check_branch
      %21 = sbr.rel (0) target = $region13
    $region12: #{tpu_custom_call.1} parent=1 // pred_region
      _
    $region13: #{tpu_custom_call.1} parent=1 // pred_fallthru
      _
    // Predicated region
    $region14: #{tpu_custom_call.1} parent=1 // pred_check
      _
    $region15: #{tpu_custom_call.1} parent=1 // pred_check_branch
      %23 = sbr.rel (0) target = $region17
    $region16: #{tpu_custom_call.1} parent=1 // pred_region
      _
    $region17: #{tpu_custom_call.1} parent=1 // pred_fallthru
      _
    // Predicated region
    $region18: #{tpu_custom_call.1} parent=1 // pred_check
      _
    $region19: #{tpu_custom_call.1} parent=1 // pred_check_branch
      %25 = sbr.rel (0) target = $region21
    $region20: #{tpu_custom_call.1} parent=1 // pred_region
      _
    $region21: #{tpu_custom_call.1} parent=1 // pred_fallthru
      _
    // Predicated region
    $region22: #{tpu_custom_call.1} parent=1 // pred_check
      _
    $region23: #{tpu_custom_call.1} parent=1 // pred_check_branch
      %27 = sbr.rel (0) target = $region25
    $region24: #{tpu_custom_call.1} parent=1 // pred_region
      _
    $region25: #{tpu_custom_call.1} parent=1 // pred_fallthru
      _
    // Predicated region
    $region26: #{tpu_custom_call.1} parent=1 // pred_check
      _
    $region27: #{tpu_custom_call.1} parent=1 // pred_check_branch
      %29 = sbr.rel (0) target = $region29
    $region28: #{tpu_custom_call.1} parent=1 // pred_region
      _
    $region29: #{tpu_custom_call.1} parent=1 // pred_fallthru
      _
    // Predicated region
    $region30: #{tpu_custom_call.1} parent=1 // pred_check
      _
    $region31: #{tpu_custom_call.1} parent=1 // pred_check_branch
      %31 = sbr.rel (0) target = $region33
    $region32: #{tpu_custom_call.1} parent=1 // pred_region
      _
    $region33: #{tpu_custom_call.1} parent=1 // pred_fallthru
      _
    // Predicated region
    $region34: #{tpu_custom_call.1} parent=1 // pred_check
      _
    $region35: #{tpu_custom_call.1} parent=1 // pred_check_branch
      %33 = sbr.rel (0) target = $region37
    $region36: #{tpu_custom_call.1} parent=1 // pred_region
      _
    $region37: #{tpu_custom_call.1} parent=1 // pred_fallthru
      _
    // Predicated region
    $region38: #{tpu_custom_call.1} parent=1 // pred_check
      _
    $region39: #{tpu_custom_call.1} parent=1 // pred_check_branch
      %35 = sbr.rel (0) target = $region41
    $region40: #{tpu_custom_call.1} parent=1 // pred_region
      _
    $region41: #{tpu_custom_call.1} parent=1 // pred_fallthru
      _
    %v37 = vld [vmem:[%s0] sm:$0xff]
    %v38 = vld [vmem:[%s0 + $0x8] sm:$0xff]
    %41 = vst [vmem:[#allocation1] ss:$2 sm:$0xff] %v37
    %s42 = scalar_lea.vmem [#allocation1], 1
    %43 = vst [vmem:[%s42] ss:$2 sm:$0xff] %v38
    %v44 = vld.sshfl [vmem:[#allocation1] sm:$0xff pattern:$0x75316420]
    %v45 = vld.sshfl [vmem:[#allocation1 + $0x8] sm:$0xff pattern:$0x75316420]
    %v48 = vpack.c.bf16 %v44, %v44
    %v49 = vpack.c.bf16 %v45, %v45
    %v50 = vld [vmem:[%s1] sm:$0xf]
    %v51 = vld [vmem:[%s1 + $0x4] sm:$0xf]
    %v52 = vld [vmem:[%s1 + $0x8] sm:$0xf]
    %v53 = vld [vmem:[%s1 + $0xc] sm:$0xf]
    %v54 = vld [vmem:[%s1 + $0x10] sm:$0xf]
    %v55 = vld [vmem:[%s1 + $0x14] sm:$0xf]
    %v56 = vld [vmem:[%s1 + $0x18] sm:$0xf]
    %v57 = vld [vmem:[%s1 + $0x1c] sm:$0xf]
    %v58 = vld [vmem:[%s1 + $0x20] sm:$0xf]
    %v59 = vld [vmem:[%s1 + $0x24] sm:$0xf]
    %v60 = vld [vmem:[%s1 + $0x28] sm:$0xf]
    %v61 = vld [vmem:[%s1 + $0x2c] sm:$0xf]
    %v62 = vld [vmem:[%s1 + $0x30] sm:$0xf]
    %v63 = vld [vmem:[%s1 + $0x34] sm:$0xf]
    %v64 = vld [vmem:[%s1 + $0x38] sm:$0xf]
    %v65 = vld [vmem:[%s1 + $0x3c] sm:$0xf]
    %v66 = vld [vmem:[%s1 + $0x40] sm:$0xf]
    %v67 = vld [vmem:[%s1 + $0x44] sm:$0xf]
    %v68 = vld [vmem:[%s1 + $0x48] sm:$0xf]
    %v69 = vld [vmem:[%s1 + $0x4c] sm:$0xf]
    %v70 = vld [vmem:[%s1 + $0x50] sm:$0xf]
    %v71 = vld [vmem:[%s1 + $0x54] sm:$0xf]
    %v72 = vld [vmem:[%s1 + $0x58] sm:$0xf]
    %v73 = vld [vmem:[%s1 + $0x5c] sm:$0xf]
    %v74 = vld [vmem:[%s1 + $0x60] sm:$0xf]
    %v75 = vld [vmem:[%s1 + $0x64] sm:$0xf]
    %v76 = vld [vmem:[%s1 + $0x68] sm:$0xf]
    %v77 = vld [vmem:[%s1 + $0x6c] sm:$0xf]
    %v78 = vld [vmem:[%s1 + $0x70] sm:$0xf]
    %v79 = vld [vmem:[%s1 + $0x74] sm:$0xf]
    %v80 = vld [vmem:[%s1 + $0x78] sm:$0xf]
    %v81 = vld [vmem:[%s1 + $0x7c] sm:$0xf]
    %v114 = vunpack.c.l.b16 %v50
    %v115 = vunpack.c.l.b16 %v51
    %v116 = vunpack.c.l.b16 %v52
    %v117 = vunpack.c.l.b16 %v53
    %v118 = vunpack.c.l.b16 %v54
    %v119 = vunpack.c.l.b16 %v55
    %v120 = vunpack.c.l.b16 %v56
    %v121 = vunpack.c.l.b16 %v57
    %v122 = vunpack.c.l.b16 %v58
    %v123 = vunpack.c.l.b16 %v59
    %v124 = vunpack.c.l.b16 %v60
    %v125 = vunpack.c.l.b16 %v61
    %v126 = vunpack.c.l.b16 %v62
    %v127 = vunpack.c.l.b16 %v63
    %v128 = vunpack.c.l.b16 %v64
    %v129 = vunpack.c.l.b16 %v65
    %v130 = vunpack.c.l.b16 %v66
    %v131 = vunpack.c.l.b16 %v67
    %v132 = vunpack.c.l.b16 %v68
    %v133 = vunpack.c.l.b16 %v69
    %v134 = vunpack.c.l.b16 %v70
    %v135 = vunpack.c.l.b16 %v71
    %v136 = vunpack.c.l.b16 %v72
    %v137 = vunpack.c.l.b16 %v73
    %v138 = vunpack.c.l.b16 %v74
    %v139 = vunpack.c.l.b16 %v75
    %v140 = vunpack.c.l.b16 %v76
    %v141 = vunpack.c.l.b16 %v77
    %v142 = vunpack.c.l.b16 %v78
    %v143 = vunpack.c.l.b16 %v79
    %v144 = vunpack.c.l.b16 %v80
    %v145 = vunpack.c.l.b16 %v81
    %v146 = vpack.c.b16 %v115, %v114
    %v147 = vpack.c.b16 %v117, %v116
    %v148 = vpack.c.b16 %v119, %v118
    %v149 = vpack.c.b16 %v121, %v120
    %v150 = vpack.c.b16 %v123, %v122
    %v151 = vpack.c.b16 %v125, %v124
    %v152 = vpack.c.b16 %v127, %v126
    %v153 = vpack.c.b16 %v129, %v128
    %v154 = vpack.c.b16 %v131, %v130
    %v155 = vpack.c.b16 %v133, %v132
    %v156 = vpack.c.b16 %v135, %v134
    %v157 = vpack.c.b16 %v137, %v136
    %v158 = vpack.c.b16 %v139, %v138
    %v159 = vpack.c.b16 %v141, %v140
    %v160 = vpack.c.b16 %v143, %v142
    %v161 = vpack.c.b16 %v145, %v144
    %178 = vmatpush.bf16.msra.mxu0 %v153
    %179 = vmatpush.bf16.msra.mxu0 %v152
    %180 = vmatpush.bf16.msra.mxu0 %v151
    %181 = vmatpush.bf16.msra.mxu0 %v150
    %182 = vmatpush.bf16.msra.mxu0 %v149
    %183 = vmatpush.bf16.msra.mxu0 %v148
    %184 = vmatpush.bf16.msra.mxu0 %v147
    %185 = vmatpush.bf16.msra.mxu0 %v146
    %186 = vmatmul.bf16.gmra.mxu0 %v48
    %v187 = vpop.f32.mrf.mxu0
    %v188 = vadd.f32 0.0, %v187
    %v189 = vpop.f32.mrf.mxu0
    %190 = vdwg.mxu0
    %191 = vmatpush.bf16.msra.mxu0 %v161
    %192 = vmatpush.bf16.msra.mxu0 %v160
    %193 = vmatpush.bf16.msra.mxu0 %v159
    %194 = vmatpush.bf16.msra.mxu0 %v158
    %195 = vmatpush.bf16.msra.mxu0 %v157
    %196 = vmatpush.bf16.msra.mxu0 %v156
    %197 = vmatpush.bf16.msra.mxu0 %v155
    %198 = vmatpush.bf16.msra.mxu0 %v154
    %199 = vmatmul.bf16.gmra.mxu0 %v49
    %v200 = vpop.f32.mrf.mxu0
    %v201 = vadd.f32 %v188, %v200
    %v202 = vpop.f32.mrf.mxu0
    %203 = vdwg.mxu0
    %v204 = vld [vmem:[%s2] sm:$0xf]
    %v205 = vld [vmem:[%s2 + $0x4] sm:$0xf]
    %v206 = vld [vmem:[%s2 + $0x8] sm:$0xf]
    %v207 = vld [vmem:[%s2 + $0xc] sm:$0xf]
    %v208 = vld [vmem:[%s2 + $0x10] sm:$0xf]
    %v209 = vld [vmem:[%s2 + $0x14] sm:$0xf]
    %v210 = vld [vmem:[%s2 + $0x18] sm:$0xf]
    %v211 = vld [vmem:[%s2 + $0x1c] sm:$0xf]
    %v212 = vld [vmem:[%s2 + $0x20] sm:$0xf]
    %v213 = vld [vmem:[%s2 + $0x24] sm:$0xf]
    %v214 = vld [vmem:[%s2 + $0x28] sm:$0xf]
    %v215 = vld [vmem:[%s2 + $0x2c] sm:$0xf]
    %v216 = vld [vmem:[%s2 + $0x30] sm:$0xf]
    %v217 = vld [vmem:[%s2 + $0x34] sm:$0xf]
    %v218 = vld [vmem:[%s2 + $0x38] sm:$0xf]
    %v219 = vld [vmem:[%s2 + $0x3c] sm:$0xf]
    %v220 = vld [vmem:[%s2 + $0x40] sm:$0xf]
    %v221 = vld [vmem:[%s2 + $0x44] sm:$0xf]
    %v222 = vld [vmem:[%s2 + $0x48] sm:$0xf]
    %v223 = vld [vmem:[%s2 + $0x4c] sm:$0xf]
    %v224 = vld [vmem:[%s2 + $0x50] sm:$0xf]
    %v225 = vld [vmem:[%s2 + $0x54] sm:$0xf]
    %v226 = vld [vmem:[%s2 + $0x58] sm:$0xf]
    %v227 = vld [vmem:[%s2 + $0x5c] sm:$0xf]
    %v228 = vld [vmem:[%s2 + $0x60] sm:$0xf]
    %v229 = vld [vmem:[%s2 + $0x64] sm:$0xf]
    %v230 = vld [vmem:[%s2 + $0x68] sm:$0xf]
    %v231 = vld [vmem:[%s2 + $0x6c] sm:$0xf]
    %v232 = vld [vmem:[%s2 + $0x70] sm:$0xf]
    %v233 = vld [vmem:[%s2 + $0x74] sm:$0xf]
    %v234 = vld [vmem:[%s2 + $0x78] sm:$0xf]
    %v235 = vld [vmem:[%s2 + $0x7c] sm:$0xf]
    %v268 = vunpack.c.l.b16 %v204
    %v269 = vunpack.c.l.b16 %v205
    %v270 = vunpack.c.l.b16 %v206
    %v271 = vunpack.c.l.b16 %v207
    %v272 = vunpack.c.l.b16 %v208
    %v273 = vunpack.c.l.b16 %v209
    %v274 = vunpack.c.l.b16 %v210
    %v275 = vunpack.c.l.b16 %v211
    %v276 = vunpack.c.l.b16 %v212
    %v277 = vunpack.c.l.b16 %v213
    %v278 = vunpack.c.l.b16 %v214
    %v279 = vunpack.c.l.b16 %v215
    %v280 = vunpack.c.l.b16 %v216
    %v281 = vunpack.c.l.b16 %v217
    %v282 = vunpack.c.l.b16 %v218
    %v283 = vunpack.c.l.b16 %v219
    %v284 = vunpack.c.l.b16 %v220
    %v285 = vunpack.c.l.b16 %v221
    %v286 = vunpack.c.l.b16 %v222
    %v287 = vunpack.c.l.b16 %v223
    %v288 = vunpack.c.l.b16 %v224
    %v289 = vunpack.c.l.b16 %v225
    %v290 = vunpack.c.l.b16 %v226
    %v291 = vunpack.c.l.b16 %v227
    %v292 = vunpack.c.l.b16 %v228
    %v293 = vunpack.c.l.b16 %v229
    %v294 = vunpack.c.l.b16 %v230
    %v295 = vunpack.c.l.b16 %v231
    %v296 = vunpack.c.l.b16 %v232
    %v297 = vunpack.c.l.b16 %v233
    %v298 = vunpack.c.l.b16 %v234
    %v299 = vunpack.c.l.b16 %v235
    %v300 = vpack.c.b16 %v269, %v268
    %v301 = vpack.c.b16 %v271, %v270
    %v302 = vpack.c.b16 %v273, %v272
    %v303 = vpack.c.b16 %v275, %v274
    %v304 = vpack.c.b16 %v277, %v276
    %v305 = vpack.c.b16 %v279, %v278
    %v306 = vpack.c.b16 %v281, %v280
    %v307 = vpack.c.b16 %v283, %v282
    %v308 = vpack.c.b16 %v285, %v284
    %v309 = vpack.c.b16 %v287, %v286
    %v310 = vpack.c.b16 %v289, %v288
    %v311 = vpack.c.b16 %v291, %v290
    %v312 = vpack.c.b16 %v293, %v292
    %v313 = vpack.c.b16 %v295, %v294
    %v314 = vpack.c.b16 %v297, %v296
    %v315 = vpack.c.b16 %v299, %v298
    %332 = vmatpush.bf16.msra.mxu0 %v307
    %333 = vmatpush.bf16.msra.mxu0 %v306
    %334 = vmatpush.bf16.msra.mxu0 %v305
    %335 = vmatpush.bf16.msra.mxu0 %v304
    %336 = vmatpush.bf16.msra.mxu0 %v303
    %337 = vmatpush.bf16.msra.mxu0 %v302
    %338 = vmatpush.bf16.msra.mxu0 %v301
    %339 = vmatpush.bf16.msra.mxu0 %v300
    %340 = vmatmul.bf16.gmra.mxu0 %v48
    %v341 = vpop.f32.mrf.mxu0
    %v342 = vadd.f32 0.0, %v341
    %v343 = vpop.f32.mrf.mxu0
    %344 = vdwg.mxu0
    %345 = vmatpush.bf16.msra.mxu0 %v315
    %346 = vmatpush.bf16.msra.mxu0 %v314
    %347 = vmatpush.bf16.msra.mxu0 %v313
    %348 = vmatpush.bf16.msra.mxu0 %v312
    %349 = vmatpush.bf16.msra.mxu0 %v311
    %350 = vmatpush.bf16.msra.mxu0 %v310
    %351 = vmatpush.bf16.msra.mxu0 %v309
    %352 = vmatpush.bf16.msra.mxu0 %v308
    %353 = vmatmul.bf16.gmra.mxu0 %v49
    %v354 = vpop.f32.mrf.mxu0
    %v355 = vadd.f32 %v342, %v354
    %v356 = vpop.f32.mrf.mxu0
    %357 = vdwg.mxu0
    %v358 = vpack.c.bf16 %v201, %v201
    %v359 = vpack.c.bf16 %v355, %v355
    %v360 = vld [vmem:[%s3] sm:$0xf]
    %v361 = vld [vmem:[%s4] sm:$0xf]
    %s362 = scalar_lea.vmem %s3, 4
    %v363 = vld [vmem:[%s362] sm:$0xf]
    %v365 = vunpack.c.l.b16 %v358
    %v366 = vpack.c.b16 %v365, %v365
    %367 = vrot.lane.b32.xlu0 %v366, 112
    %v368 = vpop.permute.xlu0 %367
    %vm369 = vcmask 64512
    %v371 = vsel %vm369, %v363, 0
    %vm373 = vcmask 1043456
    %v375 = vsel %vm373, %v368, 0
    %377 = vmatpush.bf16.msra.mxu0 0
    %378 = vmatpush.bf16.msra.mxu0 0
    %379 = vmatpush.bf16.msra.mxu0 0
    %380 = vmatpush.bf16.msra.mxu0 0
    %381 = vmatpush.bf16.msra.mxu0 0
    %382 = vmatpush.bf16.msra.mxu0 0
    %383 = vmatpush.bf16.msra.mxu0 0
    %384 = vmatpush.bf16.msra.mxu0 %v375
    %385 = vmatmul.bf16.gmra.mxu0 %v371
    %v386 = vpop.f32.mrf.mxu0
    %v387 = vadd.f32 0.0, %v386
    %v388 = vpop.f32.mrf.mxu0
    %389 = vdwg.mxu0
    %v391 = vsel %vm369, %v360, 0
    %v394 = vsel %vm373, %v358, 0
    %396 = vmatpush.bf16.msra.mxu0 0
    %397 = vmatpush.bf16.msra.mxu0 0
    %398 = vmatpush.bf16.msra.mxu0 0
    %399 = vmatpush.bf16.msra.mxu0 0
    %400 = vmatpush.bf16.msra.mxu0 0
    %401 = vmatpush.bf16.msra.mxu0 0
    %402 = vmatpush.bf16.msra.mxu0 0
    %403 = vmatpush.bf16.msra.mxu0 %v394
    %404 = vmatmul.bf16.gmra.mxu0 %v391
    %v405 = vpop.f32.mrf.mxu0
    %v406 = vadd.f32 %v387, %v405
    %v407 = vpop.f32.mrf.mxu0
    %408 = vdwg.mxu0
    %s409 = scalar_lea.vmem %s4, 4
    %v410 = vld [vmem:[%s409] sm:$0xf]
    %v412 = vunpack.c.l.b16 %v359
    %v413 = vpack.c.b16 %v412, %v412
    %414 = vrot.lane.b32.xlu0 %v413, 112
    %v415 = vpop.permute.xlu0 %414
    %v417 = vsel %vm369, %v410, 0
    %v420 = vsel %vm373, %v415, 0
    %422 = vmatpush.bf16.msra.mxu0 0
    %423 = vmatpush.bf16.msra.mxu0 0
    %424 = vmatpush.bf16.msra.mxu0 0
    %425 = vmatpush.bf16.msra.mxu0 0
    %426 = vmatpush.bf16.msra.mxu0 0
    %427 = vmatpush.bf16.msra.mxu0 0
    %428 = vmatpush.bf16.msra.mxu0 0
    %429 = vmatpush.bf16.msra.mxu0 %v420
    %430 = vmatmul.bf16.gmra.mxu0 %v417
    %v431 = vpop.f32.mrf.mxu0
    %v432 = vadd.f32 0.0, %v431
    %v433 = vpop.f32.mrf.mxu0
    %434 = vdwg.mxu0
    %v436 = vsel %vm369, %v361, 0
    %v439 = vsel %vm373, %v359, 0
    %441 = vmatpush.bf16.msra.mxu0 0
    %442 = vmatpush.bf16.msra.mxu0 0
    %443 = vmatpush.bf16.msra.mxu0 0
    %444 = vmatpush.bf16.msra.mxu0 0
    %445 = vmatpush.bf16.msra.mxu0 0
    %446 = vmatpush.bf16.msra.mxu0 0
    %447 = vmatpush.bf16.msra.mxu0 0
    %448 = vmatpush.bf16.msra.mxu0 %v439
    %449 = vmatmul.bf16.gmra.mxu0 %v436
    %v450 = vpop.f32.mrf.mxu0
    %v451 = vadd.f32 %v432, %v450
    %v452 = vpop.f32.mrf.mxu0
    %453 = vdwg.mxu0
    %s454 = scalar_lea.vmem %s3, 8
    %v455 = vld [vmem:[%s454] sm:$0xf]
    %456 = vrot.lane.b32.xlu0 %v366, 96
    %v457 = vpop.permute.xlu0 %456
    %v459 = vsel %vm369, %v455, 0
    %v462 = vsel %vm373, %v457, 0
    %464 = vmatpush.bf16.msra.mxu0 0
    %465 = vmatpush.bf16.msra.mxu0 0
    %466 = vmatpush.bf16.msra.mxu0 0
    %467 = vmatpush.bf16.msra.mxu0 0
    %468 = vmatpush.bf16.msra.mxu0 0
    %469 = vmatpush.bf16.msra.mxu0 0
    %470 = vmatpush.bf16.msra.mxu0 0
    %471 = vmatpush.bf16.msra.mxu0 %v462
    %472 = vmatmul.bf16.gmra.mxu0 %v459
    %v473 = vpop.f32.mrf.mxu0
    %v474 = vadd.f32 0.0, %v473
    %v475 = vpop.f32.mrf.mxu0
    %476 = vdwg.mxu0
    %v477 = vadd.f32 %v406, %v474
    %s478 = scalar_lea.vmem %s4, 8
    %v479 = vld [vmem:[%s478] sm:$0xf]
    %480 = vrot.lane.b32.xlu0 %v413, 96
    %v481 = vpop.permute.xlu0 %480
    %v483 = vsel %vm369, %v479, 0
    %v486 = vsel %vm373, %v481, 0
    %488 = vmatpush.bf16.msra.mxu0 0
    %489 = vmatpush.bf16.msra.mxu0 0
    %490 = vmatpush.bf16.msra.mxu0 0
    %491 = vmatpush.bf16.msra.mxu0 0
    %492 = vmatpush.bf16.msra.mxu0 0
    %493 = vmatpush.bf16.msra.mxu0 0
    %494 = vmatpush.bf16.msra.mxu0 0
    %495 = vmatpush.bf16.msra.mxu0 %v486
    %496 = vmatmul.bf16.gmra.mxu0 %v483
    %v497 = vpop.f32.mrf.mxu0
    %v498 = vadd.f32 0.0, %v497
    %v499 = vpop.f32.mrf.mxu0
    %500 = vdwg.mxu0
    %v501 = vadd.f32 %v451, %v498
    %v502 = vpack.c.bf16 %v477, %v477
    %v503 = vld [vmem:[%s5] sm:$0xff]
    %v504 = vld [vmem:[%s5 + $0x8] sm:$0xff]
    %v505 = vpack.c.bf16 %v501, %v501
    %v506 = vld [vmem:[%s6] sm:$0xff]
    %v507 = vld [vmem:[%s6 + $0x8] sm:$0xff]
    %v510 = vunpack.c.l.b16 %v506
    %v511 = vunpack.c.h.b16 %v506
    %v512 = vunpack.c.l.b16 %v507
    %v513 = vunpack.c.h.b16 %v507
    %v514 = vpack.c.b16 %v512, %v510
    %v515 = vpack.c.b16 %v513, %v511
    %vm518 = vcmask 130048
    %v520 = vsel %vm518, %v505, 0
    %522 = vmatpush.bf16.msra.mxu0 0
    %523 = vmatpush.bf16.msra.mxu0 0
    %524 = vmatpush.bf16.msra.mxu0 0
    %525 = vmatpush.bf16.msra.mxu0 0
    %526 = vmatpush.bf16.msra.mxu0 0
    %527 = vmatpush.bf16.msra.mxu0 0
    %528 = vmatpush.bf16.msra.mxu0 0
    %529 = vmatpush.bf16.msra.mxu0 %v514
    %530 = vmatmul.bf16.gmra.mxu0 %v520
    %v531 = vpop.f32.mrf.mxu0
    %v532 = vadd.f32 0.0, %v531
    %v533 = vpop.f32.mrf.mxu0
    %534 = vdwg.mxu0
    %535 = vmatpush.bf16.msra.mxu0 0
    %536 = vmatpush.bf16.msra.mxu0 0
    %537 = vmatpush.bf16.msra.mxu0 0
    %538 = vmatpush.bf16.msra.mxu0 0
    %539 = vmatpush.bf16.msra.mxu0 0
    %540 = vmatpush.bf16.msra.mxu0 0
    %541 = vmatpush.bf16.msra.mxu0 0
    %542 = vmatpush.bf16.msra.mxu0 %v515
    %543 = vmatmul.bf16.gmra.mxu0 %v520
    %v544 = vpop.f32.mrf.mxu0
    %v545 = vadd.f32 0.0, %v544
    %v546 = vpop.f32.mrf.mxu0
    %547 = vdwg.mxu0
    %548 = vst [vmem:[#allocation1] ss:$2 sm:$0xff] %v37
    %v549 = vld.sshfl [vmem:[#allocation1] sm:$0xff pattern:$0x75316420]
    %v550 = vld.sshfl [vmem:[#allocation1 + $0x8] sm:$0xff pattern:$0x75316420]
    %s551 = scalar_lea.vmem [#allocation1], 16
    %552 = vst [vmem:[%s551] ss:$2 sm:$0xff] %v38
    %v553 = vld.sshfl [vmem:[#allocation1 + $0x10] sm:$0xff pattern:$0x75316420]
    %v554 = vld.sshfl [vmem:[#allocation1 + $0x18] sm:$0xff pattern:$0x75316420]
    %v559 = vsel %vm373, %v549, 0.0
    %v560 = vrot.slane %v559, 4
    %v561 = vadd.f32 %v559, %v560
    %v562 = vrot.slane %v561, 2
    %v563 = vadd.f32 %v561, %v562
    %v564 = vrot.slane %v563, 1
    %v565 = vadd.f32 %v563, %v564
    %v566 = vsel %vm373, %v550, 0.0
    %v567 = vrot.slane %v566, 4
    %v568 = vadd.f32 %v566, %v567
    %v569 = vrot.slane %v568, 2
    %v570 = vadd.f32 %v568, %v569
    %v571 = vrot.slane %v570, 1
    %v572 = vadd.f32 %v570, %v571
    %v573 = vsel %vm373, %v553, 0.0
    %v574 = vrot.slane %v573, 4
    %v575 = vadd.f32 %v573, %v574
    %v576 = vrot.slane %v575, 2
    %v577 = vadd.f32 %v575, %v576
    %v578 = vrot.slane %v577, 1
    %v579 = vadd.f32 %v577, %v578
    %v580 = vsel %vm373, %v554, 0.0
    %v581 = vrot.slane %v580, 4
    %v582 = vadd.f32 %v580, %v581
    %v583 = vrot.slane %v582, 2
    %v584 = vadd.f32 %v582, %v583
    %v585 = vrot.slane %v584, 1
    %v586 = vadd.f32 %v584, %v585
    %v587 = vrcp.pop 4.0
    %v588 = vmul.f32 4.0, %v587
    %v589 = vsub.f32 1.0, %v588
    %v590 = vmul.f32 %v587, %v589
    %v591 = vadd.f32 %v587, %v590
    %vm592 = vweird.f32 %v587
    %v593 = vsel %vm592, %v587, %v591
    %v594 = vmul.f32 %v565, %v593
    %v595 = vmul.f32 %v572, %v593
    %v596 = vmul.f32 %v579, %v593
    %v597 = vmul.f32 %v586, %v593
    %598 = vst [vmem:[#allocation1] ss:$2 sm:$0xff] %v37
    %v599 = vld.sshfl [vmem:[#allocation1] sm:$0xff pattern:$0x75316420]
    %v600 = vld.sshfl [vmem:[#allocation1 + $0x8] sm:$0xff pattern:$0x75316420]
    %s601 = scalar_lea.vmem [#allocation1], 16
    %602 = vst [vmem:[%s601] ss:$2 sm:$0xff] %v38
    %v603 = vld.sshfl [vmem:[#allocation1 + $0x10] sm:$0xff pattern:$0x75316420]
    %v604 = vld.sshfl [vmem:[#allocation1 + $0x18] sm:$0xff pattern:$0x75316420]
    %v609 = vsel %vm373, %v599, -inf
    %v610 = vrot.slane %v609, 4
    %v611 = vmax.f32 %v609, %v610
    %v612 = vrot.slane %v611, 2
    %v613 = vmax.f32 %v611, %v612
    %v614 = vrot.slane %v613, 1
    %v615 = vmax.f32 %v613, %v614
    %v616 = vsel %vm373, %v600, -inf
    %v617 = vrot.slane %v616, 4
    %v618 = vmax.f32 %v616, %v617
    %v619 = vrot.slane %v618, 2
    %v620 = vmax.f32 %v618, %v619
    %v621 = vrot.slane %v620, 1
    %v622 = vmax.f32 %v620, %v621
    %v623 = vsel %vm373, %v603, -inf
    %v624 = vrot.slane %v623, 4
    %v625 = vmax.f32 %v623, %v624
    %v626 = vrot.slane %v625, 2
    %v627 = vmax.f32 %v625, %v626
    %v628 = vrot.slane %v627, 1
    %v629 = vmax.f32 %v627, %v628
    %v630 = vsel %vm373, %v604, -inf
    %v631 = vrot.slane %v630, 4
    %v632 = vmax.f32 %v630, %v631
    %v633 = vrot.slane %v632, 2
    %v634 = vmax.f32 %v632, %v633
    %v635 = vrot.slane %v634, 1
    %v636 = vmax.f32 %v634, %v635
    %vm641 = vcmask 1041409
    %v642 = vsel %vm641, %v596, %v594
    %v643 = vsel %vm641, %v597, %v595
    %vm650 = vcmask 1043459
    %v651 = vsel %vm650, %v629, %v615
    %v652 = vsel %vm650, %v636, %v622
    %vm655 = vcmask 1041408
    %v656 = vsel %vm655, %v642, %v651
    %v657 = vsel %vm655, %v643, %v652
    %v658 = vld [vmem:[%s8] sm:$0xff]
    %659 = vrot.lane.b32.xlu0 %v656, 34
    %v660 = vpop.permute.xlu0 %659
    %661 = vrot.lane.b32.xlu0 %v657, 34
    %v662 = vpop.permute.xlu0 %661
    %v663 = vlaneseq
    %v664 = vand.u32 %v663, 127
    %vm665 = vcmp.lt.s32.totalorder %v664, 34
    %v666 = vsel %vm665, %v660, %v662
    %v667 = vsel %vm665, %v662, %v660
    %v670 = vrot.slane %v666, 4
    %v671 = vsel %vm373, %v667, %v670
    %v673 = vmul.f32 %v658, %v671
    %s674 = scalar_lea.vmem %s8, 8
    %v675 = vld [vmem:[%s674] sm:$0xff]
    %676 = vrot.lane.b32.xlu0 %v656, 32
    %v677 = vpop.permute.xlu0 %676
    %678 = vrot.lane.b32.xlu0 %v657, 32
    %v679 = vpop.permute.xlu0 %678
    %vm680 = vcmp.lt.s32.totalorder %v664, 32
    %v681 = vsel %vm680, %v677, %v679
    %v682 = vsel %vm680, %v679, %v677
    %v685 = vrot.slane %v681, 4
    %v686 = vsel %vm373, %v682, %v685
    %v688 = vmul.f32 %v675, %v686
    %v689 = vadd.f32 %v673, %v688
    %s690 = scalar_lea.vmem %s8, 16
    %v691 = vld [vmem:[%s690] sm:$0xff]
    %692 = vrot.lane.b32.xlu0 %v656, 30
    %v693 = vpop.permute.xlu0 %692
    %694 = vrot.lane.b32.xlu0 %v657, 30
    %v695 = vpop.permute.xlu0 %694
    %vm696 = vcmp.lt.s32.totalorder %v664, 30
    %v697 = vsel %vm696, %v693, %v695
    %v698 = vsel %vm696, %v695, %v693
    %v701 = vrot.slane %v697, 4
    %v702 = vsel %vm373, %v698, %v701
    %v704 = vmul.f32 %v691, %v702
    %v705 = vadd.f32 %v689, %v704
    %s706 = scalar_lea.vmem %s8, 24
    %v707 = vld [vmem:[%s706] sm:$0xff]
    %708 = vrot.lane.b32.xlu0 %v656, 2
    %v709 = vpop.permute.xlu0 %708
    %710 = vrot.lane.b32.xlu0 %v657, 2
    %v711 = vpop.permute.xlu0 %710
    %vm712 = vcmp.lt.s32.totalorder %v664, 2
    %v713 = vsel %vm712, %v709, %v711
    %v714 = vsel %vm712, %v711, %v709
    %v717 = vrot.slane %v713, 4
    %v718 = vsel %vm373, %v714, %v717
    %v720 = vmul.f32 %v707, %v718
    %v721 = vadd.f32 %v705, %v720
    %s722 = scalar_lea.vmem %s8, 32
    %v723 = vld [vmem:[%s722] sm:$0xff]
    %v726 = vrot.slane %v657, 4
    %v727 = vsel %vm373, %v656, %v726
    %v729 = vmul.f32 %v723, %v727
    %v730 = vadd.f32 %v721, %v729
    %s731 = scalar_lea.vmem %s8, 40
    %v732 = vld [vmem:[%s731] sm:$0xff]
    %733 = vrot.lane.b32.xlu0 %v656, 126
    %v734 = vpop.permute.xlu0 %733
    %735 = vrot.lane.b32.xlu0 %v657, 126
    %v736 = vpop.permute.xlu0 %735
    %vm737 = vcmp.lt.s32.totalorder %v664, 126
    %v738 = vsel %vm737, %v734, %v736
    %v739 = vsel %vm737, %v736, %v734
    %v742 = vrot.slane %v739, 4
    %v743 = vsel %vm373, %v738, %v742
    %v745 = vmul.f32 %v732, %v743
    %v746 = vadd.f32 %v730, %v745
    %s747 = scalar_lea.vmem %s8, 48
    %v748 = vld [vmem:[%s747] sm:$0xff]
    %749 = vrot.lane.b32.xlu0 %v656, 98
    %v750 = vpop.permute.xlu0 %749
    %751 = vrot.lane.b32.xlu0 %v657, 98
    %v752 = vpop.permute.xlu0 %751
    %vm753 = vcmp.lt.s32.totalorder %v664, 98
    %v754 = vsel %vm753, %v750, %v752
    %v755 = vsel %vm753, %v752, %v750
    %v758 = vrot.slane %v755, 4
    %v759 = vsel %vm373, %v754, %v758
    %v761 = vmul.f32 %v748, %v759
    %v762 = vadd.f32 %v746, %v761
    %s763 = scalar_lea.vmem %s8, 56
    %v764 = vld [vmem:[%s763] sm:$0xff]
    %765 = vrot.lane.b32.xlu0 %v656, 96
    %v766 = vpop.permute.xlu0 %765
    %767 = vrot.lane.b32.xlu0 %v657, 96
    %v768 = vpop.permute.xlu0 %767
    %vm769 = vcmp.lt.s32.totalorder %v664, 96
    %v770 = vsel %vm769, %v766, %v768
    %v771 = vsel %vm769, %v768, %v766
    %v774 = vrot.slane %v771, 4
    %v775 = vsel %vm373, %v770, %v774
    %v777 = vmul.f32 %v764, %v775
    %v778 = vadd.f32 %v762, %v777
    %s779 = scalar_lea.vmem %s8, 64
    %v780 = vld [vmem:[%s779] sm:$0xff]
    %781 = vrot.lane.b32.xlu0 %v656, 94
    %v782 = vpop.permute.xlu0 %781
    %783 = vrot.lane.b32.xlu0 %v657, 94
    %v784 = vpop.permute.xlu0 %783
    %vm785 = vcmp.lt.s32.totalorder %v664, 94
    %v786 = vsel %vm785, %v782, %v784
    %v787 = vsel %vm785, %v784, %v782
    %v790 = vrot.slane %v787, 4
    %v791 = vsel %vm373, %v786, %v790
    %v793 = vmul.f32 %v780, %v791
    %v794 = vadd.f32 %v778, %v793
    %v796 = vrot.slane %v794, 6
    %v797 = vrot.slane %v796, 4
    %v799 = vadd.f32 %v794, %v797
    %v800 = vld [vmem:[%s9] sm:$0xf]
    %802 = vst [vmem:[#allocation1] ss:$2 sm:$0xff] %v799
    %v803 = vld.sshfl [vmem:[#allocation1] sm:$0xff pattern:$0x75316420]
    %v804 = vld.sshfl [vmem:[#allocation1 + $0x8] sm:$0xff pattern:$0x75316420]
    %807 = vrot.lane.b32.xlu0 %v803, 34
    %v808 = vpop.permute.xlu0 %807
    %809 = vrot.lane.b32.xlu0 %v804, 34
    %v810 = vpop.permute.xlu0 %809
    %v811 = vsel %vm665, %v808, %v810
    %v812 = vsel %vm665, %v810, %v808
    %v815 = vrot.slane %v811, 6
    %v816 = vsel %vm655, %v812, %v815
    %v818 = vmul.f32 %v800, %v816
    %s819 = scalar_lea.vmem %s9, 4
    %v820 = vld [vmem:[%s819] sm:$0xf]
    %821 = vst [vmem:[#allocation1] ss:$2 sm:$0xff] %v799
    %v822 = vld.sshfl [vmem:[#allocation1] sm:$0xff pattern:$0x75316420]
    %v823 = vld.sshfl [vmem:[#allocation1 + $0x8] sm:$0xff pattern:$0x75316420]
    %826 = vrot.lane.b32.xlu0 %v822, 32
    %v827 = vpop.permute.xlu0 %826
    %828 = vrot.lane.b32.xlu0 %v823, 32
    %v829 = vpop.permute.xlu0 %828
    %v830 = vsel %vm680, %v827, %v829
    %v831 = vsel %vm680, %v829, %v827
    %v834 = vrot.slane %v830, 6
    %v835 = vsel %vm655, %v831, %v834
    %v837 = vmul.f32 %v820, %v835
    %v838 = vadd.f32 %v818, %v837
    %s839 = scalar_lea.vmem %s9, 8
    %v840 = vld [vmem:[%s839] sm:$0xf]
    %841 = vst [vmem:[#allocation1] ss:$2 sm:$0xff] %v799
    %v842 = vld.sshfl [vmem:[#allocation1] sm:$0xff pattern:$0x75316420]
    %v843 = vld.sshfl [vmem:[#allocation1 + $0x8] sm:$0xff pattern:$0x75316420]
    %846 = vrot.lane.b32.xlu0 %v842, 30
    %v847 = vpop.permute.xlu0 %846
    %848 = vrot.lane.b32.xlu0 %v843, 30
    %v849 = vpop.permute.xlu0 %848
    %v850 = vsel %vm696, %v847, %v849
    %v851 = vsel %vm696, %v849, %v847
    %v854 = vrot.slane %v850, 6
    %v855 = vsel %vm655, %v851, %v854
    %v857 = vmul.f32 %v840, %v855
    %v858 = vadd.f32 %v838, %v857
    %s859 = scalar_lea.vmem %s9, 12
    %v860 = vld [vmem:[%s859] sm:$0xf]
    %861 = vst [vmem:[#allocation1] ss:$2 sm:$0xff] %v799
    %v862 = vld.sshfl [vmem:[#allocation1] sm:$0xff pattern:$0x75316420]
    %v863 = vld.sshfl [vmem:[#allocation1 + $0x8] sm:$0xff pattern:$0x75316420]
    %866 = vrot.lane.b32.xlu0 %v862, 2
    %v867 = vpop.permute.xlu0 %866
    %868 = vrot.lane.b32.xlu0 %v863, 2
    %v869 = vpop.permute.xlu0 %868
    %v870 = vsel %vm712, %v867, %v869
    %v871 = vsel %vm712, %v869, %v867
    %v874 = vrot.slane %v870, 6
    %v875 = vsel %vm655, %v871, %v874
    %v877 = vmul.f32 %v860, %v875
    %v878 = vadd.f32 %v858, %v877
    %s879 = scalar_lea.vmem %s9, 16
    %v880 = vld [vmem:[%s879] sm:$0xf]
    %v881 = vrot.slane %v799, 2
    %v882 = vsel %vm655, %v799, %v881
    %v884 = vmul.f32 %v880, %v882
    %v885 = vadd.f32 %v878, %v884
    %s886 = scalar_lea.vmem %s9, 20
    %v887 = vld [vmem:[%s886] sm:$0xf]
    %888 = vst [vmem:[#allocation1] ss:$2 sm:$0xff] %v799
    %v889 = vld.sshfl [vmem:[#allocation1] sm:$0xff pattern:$0x75316420]
    %v890 = vld.sshfl [vmem:[#allocation1 + $0x8] sm:$0xff pattern:$0x75316420]
    %893 = vrot.lane.b32.xlu0 %v889, 126
    %v894 = vpop.permute.xlu0 %893
    %895 = vrot.lane.b32.xlu0 %v890, 126
    %v896 = vpop.permute.xlu0 %895
    %v897 = vsel %vm737, %v894, %v896
    %v898 = vsel %vm737, %v896, %v894
    %v901 = vrot.slane %v898, 6
    %v902 = vsel %vm655, %v897, %v901
    %v904 = vmul.f32 %v887, %v902
    %v905 = vadd.f32 %v885, %v904
    %s906 = scalar_lea.vmem %s9, 24
    %v907 = vld [vmem:[%s906] sm:$0xf]
    %908 = vst [vmem:[#allocation1] ss:$2 sm:$0xff] %v799
    %v909 = vld.sshfl [vmem:[#allocation1] sm:$0xff pattern:$0x75316420]
    %v910 = vld.sshfl [vmem:[#allocation1 + $0x8] sm:$0xff pattern:$0x75316420]
    %913 = vrot.lane.b32.xlu0 %v909, 98
    %v914 = vpop.permute.xlu0 %913
    %915 = vrot.lane.b32.xlu0 %v910, 98
    %v916 = vpop.permute.xlu0 %915
    %v917 = vsel %vm753, %v914, %v916
    %v918 = vsel %vm753, %v916, %v914
    %v921 = vrot.slane %v918, 6
    %v922 = vsel %vm655, %v917, %v921
    %v924 = vmul.f32 %v907, %v922
    %v925 = vadd.f32 %v905, %v924
    %s926 = scalar_lea.vmem %s9, 28
    %v927 = vld [vmem:[%s926] sm:$0xf]
    %928 = vst [vmem:[#allocation1] ss:$2 sm:$0xff] %v799
    %v929 = vld.sshfl [vmem:[#allocation1] sm:$0xff pattern:$0x75316420]
    %v930 = vld.sshfl [vmem:[#allocation1 + $0x8] sm:$0xff pattern:$0x75316420]
    %933 = vrot.lane.b32.xlu0 %v929, 96
    %v934 = vpop.permute.xlu0 %933
    %935 = vrot.lane.b32.xlu0 %v930, 96
    %v936 = vpop.permute.xlu0 %935
    %v937 = vsel %vm769, %v934, %v936
    %v938 = vsel %vm769, %v936, %v934
    %v941 = vrot.slane %v938, 6
    %v942 = vsel %vm655, %v937, %v941
    %v944 = vmul.f32 %v927, %v942
    %v945 = vadd.f32 %v925, %v944
    %s946 = scalar_lea.vmem %s9, 32
    %v947 = vld [vmem:[%s946] sm:$0xf]
    %948 = vst [vmem:[#allocation1] ss:$2 sm:$0xff] %v799
    %v949 = vld.sshfl [vmem:[#allocation1] sm:$0xff pattern:$0x75316420]
    %v950 = vld.sshfl [vmem:[#allocation1 + $0x8] sm:$0xff pattern:$0x75316420]
    %953 = vrot.lane.b32.xlu0 %v949, 94
    %v954 = vpop.permute.xlu0 %953
    %955 = vrot.lane.b32.xlu0 %v950, 94
    %v956 = vpop.permute.xlu0 %955
    %v957 = vsel %vm785, %v954, %v956
    %v958 = vsel %vm785, %v956, %v954
    %v961 = vrot.slane %v958, 6
    %v962 = vsel %vm655, %v957, %v961
    %v964 = vmul.f32 %v947, %v962
    %v965 = vadd.f32 %v945, %v964
    %v968 = vunpack.c.l.b16 %v503
    %v969 = vunpack.c.h.b16 %v503
    %v970 = vunpack.c.l.b16 %v504
    %v971 = vunpack.c.h.b16 %v504
    %v972 = vpack.c.b16 %v970, %v968
    %v973 = vpack.c.b16 %v971, %v969
    %v977 = vsel %vm518, %v502, 0
    %979 = vmatpush.bf16.msra.mxu0 0
    %980 = vmatpush.bf16.msra.mxu0 0
    %981 = vmatpush.bf16.msra.mxu0 0
    %982 = vmatpush.bf16.msra.mxu0 0
    %983 = vmatpush.bf16.msra.mxu0 0
    %984 = vmatpush.bf16.msra.mxu0 0
    %985 = vmatpush.bf16.msra.mxu0 0
    %986 = vmatpush.bf16.msra.mxu0 %v972
    %987 = vmatmul.bf16.gmra.mxu0 %v977
    %v988 = vpop.f32.mrf.mxu0
    %v989 = vadd.f32 %v532, %v988
    %v990 = vpop.f32.mrf.mxu0
    %991 = vdwg.mxu0
    %992 = vmatpush.bf16.msra.mxu0 0
    %993 = vmatpush.bf16.msra.mxu0 0
    %994 = vmatpush.bf16.msra.mxu0 0
    %995 = vmatpush.bf16.msra.mxu0 0
    %996 = vmatpush.bf16.msra.mxu0 0
    %997 = vmatpush.bf16.msra.mxu0 0
    %998 = vmatpush.bf16.msra.mxu0 0
    %999 = vmatpush.bf16.msra.mxu0 %v973
    %1000 = vmatmul.bf16.gmra.mxu0 %v977
    %v1001 = vpop.f32.mrf.mxu0
    %v1002 = vadd.f32 %v545, %v1001
    %v1003 = vpop.f32.mrf.mxu0
    %1004 = vdwg.mxu0
    %v1007 = vrot.slane %v1002, 4
    %v1008 = vsel %vm373, %v989, %v1007
    %v1009 = vsel %vm373, %v1007, %v989
    %v1010 = vrot.slane %v1009, 4
    %v1014 = vrot.slane %v965, 1
    %v1015 = vrot.slane %v965, 2
    %v1016 = vrot.slane %v965, 3
    %vm1017 = vcmask 1040384
    %v1018 = vsel %vm1017, %v965, %v1014
    %vm1019 = vcmask 1042434
    %v1020 = vsel %vm1019, %v1015, %v1016
    %v1021 = vsel %vm655, %v1018, %v1020
    %v1022 = vsel %vm641, %v965, %v1014
    %v1023 = vsel %vm650, %v1015, %v1016
    %vm1024 = vcmask 1042433
    %v1025 = vsel %vm1024, %v1022, %v1023
    %v1026 = vrot.slane %v1025, 1
    %v1027 = vperm.slane %v1021, 0
    %v1028 = vperm.slane %v1021, 1
    %v1029 = vperm.slane %v1026, 0
    %v1030 = vperm.slane %v1026, 1
    %v1031 = vrot.slane %v1028, 4
    %v1032 = vrot.slane %v1030, 4
    %v1033 = vsel %vm373, %v1027, %v1031
    %v1034 = vsel %vm373, %v1029, %v1032
    %v1037 = vadd.f32 %v1008, %v1033
    %v1038 = vadd.f32 %v1010, %v1034
    %v1039 = vld [vmem:[%s7] sm:$0xf]
    %1041 = vset.pattern.permute.xlu0 0
    %1042 = vperm.xlu0 %1041, %v1039
    %v1043 = vpop.permute.xlu0 %1042
    %v1045 = vunpack.c.l.s4 839922192
    %v1046 = vunpack.c.0.s8 %v1045
    %v1047 = vperm.slane %v1043, %v1046
    %v1049 = vadd.f32 %v1037, %v1047
    %v1050 = vadd.f32 %v1038, %v1047
    %v1051 = vxor.u32 %v1049, 2147483648
    %v1052 = vxor.u32 %v1050, 2147483648
    %v1053 = vmul.f32 %v1051, 1.442695
    %v1054 = vpow.pop %v1053
    %v1055 = vmul.f32 %v1052, 1.442695
    %v1056 = vpow.pop %v1055
    %v1057 = vadd.f32 %v1054, 1.0
    %v1058 = vadd.f32 %v1056, 1.0
    %v1059 = vrcp.pop %v1057
    %v1060 = vmul.f32 %v1057, %v1059
    %v1061 = vsub.f32 1.0, %v1060
    %v1062 = vmul.f32 %v1059, %v1061
    %v1063 = vadd.f32 %v1059, %v1062
    %vm1064 = vweird.f32 %v1057
    %vm1065 = vweird.f32 %v1059
    %vm1066 = vmor %vm1064, %vm1065
    %v1067 = vsel %vm1066, %v1059, %v1063
    %v1068 = vand.u32 2147483647, %v1057
    %vm1069 = vcmp.eq.f32.partialorder %v1068, 8.507059e+37
    %v1070 = vand.u32 %v1057, 2147483648
    %v1071 = vor.u32 1.1754944e-38, %v1070
    %v1072 = vsel %vm1069, %v1071, %v1067
    %v1073 = vmul.f32 1.0, %v1072
    %v1074 = vrcp.pop %v1058
    %v1075 = vmul.f32 %v1058, %v1074
    %v1076 = vsub.f32 1.0, %v1075
    %v1077 = vmul.f32 %v1074, %v1076
    %v1078 = vadd.f32 %v1074, %v1077
    %vm1079 = vweird.f32 %v1058
    %vm1080 = vweird.f32 %v1074
    %vm1081 = vmor %vm1079, %vm1080
    %v1082 = vsel %vm1081, %v1074, %v1078
    %v1083 = vand.u32 2147483647, %v1058
    %vm1084 = vcmp.eq.f32.partialorder %v1083, 8.507059e+37
    %v1085 = vand.u32 %v1058, 2147483648
    %v1086 = vor.u32 1.1754944e-38, %v1085
    %v1087 = vsel %vm1084, %v1086, %v1082
    %v1088 = vmul.f32 1.0, %v1087
    %v1089 = vmul.f32 %v37, %v1073
    %v1090 = vmul.f32 %v38, %v1088
    %v1091 = vadd.f32 %v37, %v1089
    %v1092 = vadd.f32 %v38, %v1090
    %1093 = vst [vmem:[#allocation2] sm:$0xff] %v1091
    %1094 = vst [vmem:[#allocation2 + $0x8] sm:$0xff] %v1092
    // Predicated region
    $region42: #{tpu_custom_call.1} parent=1 // pred_check
      _
    $region43: #{tpu_custom_call.1} parent=1 // pred_check_branch
      %1096 = sbr.rel (0) target = $region45
    $region44: #{tpu_custom_call.1} parent=1 // pred_region
      %1098 = vsyncadd [#allocation3], 0
      %s1099 = sshll.u32 [#allocation2], 4
      %s1100 = int_to_ptr.vmem [resolvable:$true] %s1099
      %s1101 = sshll.u32 %s10, 4
      %s1102 = int_to_ptr.hbm [resolvable:$true] %s1101
      %1107 = dma.vmem_to_hbm [thread:$0]  %s1100, 256, %s1102, [#allocation3], 128, 128, 8
    $region45: #{tpu_custom_call.1} parent=1 // pred_fallthru
      _
    // Predicated region
    $region46: #{tpu_custom_call.1} parent=1 // pred_check
      _
    $region47: #{tpu_custom_call.1} parent=1 // pred_check_branch
      %1109 = sbr.rel (0) target = $region49
    $region48: #{tpu_custom_call.1} parent=1 // pred_region
      %1111 = dma.done [#allocation3], 256
    $region49: #{tpu_custom_call.1} parent=1 // pred_fallthru
      _
    %1112 = vsyncpa [#allocation3], 1

</llo_original>
